<compile_context>
chip_gen: v5e
topology: v5e:2x2
jax: 0.10.0
libtpu: 0.0.40
codegen_flags: <defaults>
</compile_context>

<pallas_src>
import functools

import jax
import jax.numpy as jnp
from jax.experimental import pallas as pl
from jax.experimental.pallas import tpu as pltpu


_MIB = 1024 * 1024


# ---------------------------------------------------------------------------
# Hardware / shape helpers
# ---------------------------------------------------------------------------
def _vmem_capacity_bytes():
    """Per-TensorCore VMEM capacity; conservative fallback if unqueryable."""
    try:
        return int(pltpu.get_tpu_info().vmem_capacity_bytes)
    except Exception:
        return 64 * _MIB          # v7x per-TC capacity (most restrictive gen)


def _round_up(x, m):
    return ((x + m - 1) // m) * m


def _pad2d(x, rows, cols):
    r, c = x.shape
    if r == rows and c == cols:
        return x
    return jnp.pad(x, ((0, rows - r), (0, cols - c)))


def _pad_rows(x, rows):
    r = x.shape[0]
    if r == rows:
        return x
    return jnp.pad(x, ((0, rows - r), (0, 0)))


def _pick_tile(n, pref, quantum=128):
    """Largest multiple of `quantum` that divides n (itself a multiple of
    quantum by padding) and is <= pref."""
    t = max(quantum, min(pref, n) - (min(pref, n) % quantum))
    while n % t:
        t -= quantum
    return t


def _row_tile_pref(m):
    # Keep >=2 row tiles whenever possible so the "parallel" grid axis can be
    # megacore-sharded across both TensorCores on v7x; cap at 512 rows
    # (MXU-filling, amortizes the ~0.35us per-grid-step overhead).
    if m >= 1024:
        return 512
    if m >= 256:
        return m // 2
    return m


# ---------------------------------------------------------------------------
# Fused path: whole graph resident in VMEM, all layers in one pallas_call.
# ---------------------------------------------------------------------------
def _lgcn_fused_kernel(a_hbm_ref, e0_ref, out_ref, a_vmem, *, n_layers):
    # Adjacency is read from HBM exactly once into a *single-buffered* VMEM
    # scratch (grid=(1,) has nothing to double-buffer against).
    pltpu.sync_copy(a_hbm_ref, a_vmem)
    ego = e0_ref[...].astype(jnp.float32)
    acc = jnp.zeros(ego.shape, jnp.float32)
    # TODO(synk): on v6e/v7x a (D, N)-transposed ego layout would widen the
    # MXU output lane dimension from D to N for this compute-bound path.
    for _ in range(n_layers):                          # small static unroll
        ego = jnp.dot(a_vmem[...], ego.astype(jnp.bfloat16),
                      preferred_element_type=jnp.float32)
        acc = acc + ego
    out_ref[...] = acc * jnp.float32(1.0 / n_layers)   # mean over layers


def _fused_vmem_bytes(n, d):
    # single-buffered resident A (bf16) + pipelined (N, D) in/out + f32 temps
    return n * n * 2 + 14 * n * d * 4


def _lgcn_fused(adj_bf16, ego0_f32, n_layers, vmem_cap):
    n, d = ego0_f32.shape
    kernel = functools.partial(_lgcn_fused_kernel, n_layers=n_layers)
    return pl.pallas_call(
        kernel,
        out_shape=jax.ShapeDtypeStruct((n, d), jnp.float32),
        grid=(1,),
        in_specs=[
            pl.BlockSpec(memory_space=pl.ANY),          # adjacency: manual DMA
            pl.BlockSpec((n, d), lambda i: (0, 0)),     # initial ego embeddings
        ],
        out_specs=pl.BlockSpec((n, d), lambda i: (0, 0)),
        scratch_shapes=[pltpu.VMEM((n, n), jnp.bfloat16)],
        compiler_params=pltpu.CompilerParams(
            dimension_semantics=("arbitrary",),
            vmem_limit_bytes=int(vmem_cap),
        ),
    )(adj_bf16, ego0_f32)


# ---------------------------------------------------------------------------
# Scalable path: per-layer kernel, K-tiled contraction with f32 accumulator.
# ---------------------------------------------------------------------------
def _lgcn_layer_kernel(*refs, scale, add_prev, ego_resident, tk):
    """One propagation step for a (row-tile i, K-tile k) grid point.

    refs (add_prev=True):  a (tm,tk) bf16, ego, prev_sum (tm,D) f32,
                           new_ego (tm,D) bf16, new_sum (tm,D) f32, f32 scratch
    refs (add_prev=False): the same without prev_sum (first layer: the running
                           sum is initialized in-kernel, no HBM zeros stream).
    ego is either the full VMEM-resident (K, D) block (ego_resident=True) or a
    streamed (tk, D) K-slab.
    """
    if add_prev:
        a_ref, e_ref, s_ref, o_ref, so_ref, acc_ref = refs
    else:
        a_ref, e_ref, o_ref, so_ref, acc_ref = refs
        s_ref = None
    k = pl.program_id(1)

    @pl.when(k == 0)
    def _():
        acc_ref[...] = jnp.zeros_like(acc_ref)

    if ego_resident:
        start = pl.multiple_of(k * tk, 128)
        e_blk = e_ref[pl.ds(start, tk), :]
    else:
        e_blk = e_ref[...]

    acc_ref[...] += jnp.dot(a_ref[...], e_blk,
                            preferred_element_type=jnp.float32)

    @pl.when(k == pl.num_programs(1) - 1)
    def _():
        new = acc_ref[...]
        o_ref[...] = new.astype(o_ref.dtype)
        total = new if s_ref is None else s_ref[...] + new
        if scale != 1.0:                       # static: folded 1/n_layers
            total = total * jnp.float32(scale)
        so_ref[...] = total


def _propagate_layer(adj_bf16, ego_bf16, prev_sum, *, scale, resident_budget,
                     vmem_cap):
    """Returns (new_ego bf16, new_sum f32) = (A @ ego, prev_sum + A @ ego)."""
    m, k_dim = adj_bf16.shape
    k_e, d = ego_bf16.shape
    assert k_dim == k_e
    add_prev = prev_sum is not None

    tm = _pick_tile(m, _row_tile_pref(m))
    tk = _pick_tile(k_dim, 2048)

    # Conservative footprint assuming default 2-deep pipelining on every spec.
    tile_bytes = (2 * tm * tk * 2                       # adjacency tiles
                  + 2 * tm * d * (2 + 4)                # new-ego + new-sum out
                  + (2 * tm * d * 4 if add_prev else 0)
                  + tm * d * 4)                         # f32 accumulator scratch
    ego_resident = tile_bytes + 2 * k_dim * d * 2 <= resident_budget

    kernel = functools.partial(_lgcn_layer_kernel, scale=scale,
                               add_prev=add_prev, ego_resident=ego_resident,
                               tk=tk)
    if ego_resident:
        # Whole (K, D) ego stays in VMEM; the block index never changes so it
        # is DMA'd from HBM once per layer instead of once per row tile.
        e_spec = pl.BlockSpec((k_dim, d), lambda i, k: (0, 0))
    else:
        e_spec = pl.BlockSpec((tk, d), lambda i, k: (k, 0))

    in_specs = [pl.BlockSpec((tm, tk), lambda i, k: (i, k)), e_spec]
    args = [adj_bf16, ego_bf16]
    io_aliases = {}
    if add_prev:
        in_specs.append(pl.BlockSpec((tm, d), lambda i, k: (i, 0)))
        args.append(prev_sum)
        io_aliases = {2: 1}   # prev_sum (operand 2) updated in place -> out 1

    # TODO(synk): fp8 (v7x) / int8 (v5e/v6e) adjacency with a per-row scale
    # folded into the epilogue would halve the dominant N^2 stream again, and
    # pipeline_mode=pl.Buffered(3) on the adjacency spec is worth a sweep.
    return pl.pallas_call(
        kernel,
        out_shape=(jax.ShapeDtypeStruct((m, d), jnp.bfloat16),   # new ego
                   jax.ShapeDtypeStruct((m, d), jnp.float32)),   # running sum
        grid=(m // tm, k_dim // tk),
        in_specs=in_specs,
        out_specs=(pl.BlockSpec((tm, d), lambda i, k: (i, 0)),
                   pl.BlockSpec((tm, d), lambda i, k: (i, 0))),
        scratch_shapes=[pltpu.VMEM((tm, d), jnp.float32)],
        input_output_aliases=io_aliases,
        compiler_params=pltpu.CompilerParams(
            dimension_semantics=("parallel", "arbitrary"),
            vmem_limit_bytes=int(vmem_cap),
        ),
    )(*args)


# ---------------------------------------------------------------------------
# Public forward (matches FedGNN_LGCN_Encoder.forward default path).
# ---------------------------------------------------------------------------
def fedgnn_lgcn_encoder_forward(norm_adj, user_emb, item_emb, n_layers,
                                bipartite=True, force_path=None):
    """Pallas-backed FedGNN_LGCN_Encoder.forward() (deterministic path).

    Returns (user_all_embeddings, item_all_embeddings).  Like the PyTorch
    module, the mean is over the n_layers propagated embeddings only.
    `bipartite=True` exploits FedGNN's norm_adj structure (zero (U,U)/(I,I)
    quadrants) in the tiled path; pass bipartite=False for an arbitrary
    square norm_adj.
    """
    if n_layers < 1:
        raise ValueError("n_layers must be >= 1")
    # TODO(synk): perturbed=True (torch.rand_like + F.normalize noise) and the
    # list-valued perturbed_adj branches are not implemented; only the default
    # deterministic propagation path is reproduced.
    u_num, d = user_emb.shape
    i_num = item_emb.shape[0]
    n = u_num + i_num

    capacity = _vmem_capacity_bytes()
    vmem_cap = int(capacity * 0.85)
    resident_budget = int(capacity * 0.70)
    # On <=64 MiB/TC chips (v7x) the fused grid=(1,) path runs on a single
    # TensorCore, so prefer the megacore-sharded tiled path beyond small N.
    fused_budget = 24 * _MIB if capacity <= 80 * _MIB else int(capacity * 0.80)

    if force_path is None:
        use_fused = _fused_vmem_bytes(n, d) <= fused_budget
    else:
        use_fused = force_path == "fused"

    if use_fused:
        ego0 = jnp.concatenate([user_emb, item_emb], axis=0).astype(jnp.float32)
        all_emb = _lgcn_fused(norm_adj.astype(jnp.bfloat16), ego0, n_layers,
                              vmem_cap)
        return all_emb[:u_num], all_emb[u_num:]

    if bipartite:
        # Only the U x I / I x U quadrants of FedGNN's norm_adj are nonzero:
        # each layer becomes two rectangular matmuls, never streaming the
        # structurally-zero (U,U)/(I,I) quadrants (>=2x less HBM traffic).
        u_pad, i_pad = _round_up(u_num, 128), _round_up(i_num, 128)
        a_ui = _pad2d(norm_adj[:u_num, u_num:].astype(jnp.bfloat16), u_pad, i_pad)
        a_iu = _pad2d(norm_adj[u_num:, :u_num].astype(jnp.bfloat16), i_pad, u_pad)
        ego_u = _pad_rows(user_emb.astype(jnp.bfloat16), u_pad)
        ego_i = _pad_rows(item_emb.astype(jnp.bfloat16), i_pad)
        sum_u = sum_i = None
        for layer in range(n_layers):
            scale = 1.0 / n_layers if layer == n_layers - 1 else 1.0
            new_u, sum_u = _propagate_layer(a_ui, ego_i, sum_u, scale=scale,
                                            resident_budget=resident_budget,
                                            vmem_cap=vmem_cap)
            new_i, sum_i = _propagate_layer(a_iu, ego_u, sum_i, scale=scale,
                                            resident_budget=resident_budget,
                                            vmem_cap=vmem_cap)
            ego_u, ego_i = new_u, new_i
        return sum_u[:u_num], sum_i[:i_num]

    # Full-matrix tiled path (arbitrary square norm_adj).
    n_pad = _round_up(n, 128)
    adj = _pad2d(norm_adj.astype(jnp.bfloat16), n_pad, n_pad)
    ego = _pad_rows(
        jnp.concatenate([user_emb, item_emb], axis=0).astype(jnp.bfloat16),
        n_pad)
    layer_sum = None
    for layer in range(n_layers):
        scale = 1.0 / n_layers if layer == n_layers - 1 else 1.0
        ego, layer_sum = _propagate_layer(adj, ego, layer_sum, scale=scale,
                                          resident_budget=resident_budget,
                                          vmem_cap=vmem_cap)
    all_emb = layer_sum[:n]
    return all_emb[:u_num], all_emb[u_num:]


# ---------------------------------------------------------------------------
# Test harness
# ---------------------------------------------------------------------------
def xavier_uniform(key, shape, dtype=jnp.float32):
    fan_in, fan_out = shape
    bound = (6.0 / (fan_in + fan_out)) ** 0.5
    return jax.random.uniform(key, shape, dtype=dtype, minval=-bound, maxval=bound)


def build_norm_adj(key, user_num, item_num, dtype=jnp.float32):
    """Symmetric-normalized bipartite adjacency D^{-1/2} A D^{-1/2} (dense)."""
    r = jax.random.bernoulli(key, p=0.1, shape=(user_num, item_num)).astype(dtype)
    n = user_num + item_num
    a = jnp.zeros((n, n), dtype=dtype)
    a = a.at[:user_num, user_num:].set(r)
    a = a.at[user_num:, :user_num].set(r.T)
    deg = a.sum(axis=1)
    d_inv_sqrt = jnp.where(deg > 0, 1.0 / jnp.sqrt(deg), 0.0)
    return d_inv_sqrt[:, None] * a * d_inv_sqrt[None, :]


if __name__ == "__main__":
    # Small deterministic problem: U=48, I=80 (N=128), D=128, 3 layers.
    user_num, item_num, emb_size, n_layers = 48, 80, 128, 3

    key = jax.random.PRNGKey(0)
    k_adj, k_user, k_item = jax.random.split(key, 3)

    norm_adj = build_norm_adj(k_adj, user_num, item_num)
    user_emb = xavier_uniform(k_user, (user_num, emb_size))
    item_emb = xavier_uniform(k_item, (item_num, emb_size))

    fns = {
        "auto-fused": jax.jit(functools.partial(
            fedgnn_lgcn_encoder_forward, n_layers=n_layers)),
        "tiled-bipartite": jax.jit(functools.partial(
            fedgnn_lgcn_encoder_forward, n_layers=n_layers,
            force_path="tiled", bipartite=True)),
        "tiled-full": jax.jit(functools.partial(
            fedgnn_lgcn_encoder_forward, n_layers=n_layers,
            force_path="tiled", bipartite=False)),
    }

    outs = {name: fn(norm_adj, user_emb, item_emb) for name, fn in fns.items()}
    jax.block_until_ready(outs)

    # Pure-JAX reference (same bf16-quantized adjacency, f32 math).
    adj_q = norm_adj.astype(jnp.bfloat16).astype(jnp.float32)
    ego = jnp.concatenate([user_emb, item_emb], axis=0)
    layers = []
    for _ in range(n_layers):
        ego = adj_q @ ego
        layers.append(ego)
    ref = jnp.mean(jnp.stack(layers, axis=1), axis=1)
    ref_user, ref_item = ref[:user_num], ref[user_num:]

    for name, (u_out, i_out) in outs.items():
        assert u_out.shape == (user_num, emb_size), name
        assert i_out.shape == (item_num, emb_size), name
        # bf16 adjacency / ego streams inside the kernels -> loosened tolerance
        assert jnp.allclose(u_out, ref_user, atol=5e-3, rtol=2e-2), name
        assert jnp.allclose(i_out, ref_item, atol=5e-3, rtol=2e-2), name

    print("KERNEL_OK")
</pallas_src>

<mosaic_0001>
module attributes {stable_mosaic.version = 11 : i64} {
  func.func @_lgcn_fused_kernel(%arg0: i32, %arg1: memref<128x128xbf16, #tpu.memory_space<any>>, %arg2: memref<128x128xf32, #tpu.memory_space<vmem>>, %arg3: memref<128x128xf32, #tpu.memory_space<vmem>>, %arg4: memref<128x128xbf16, #tpu.memory_space<vmem>>) attributes {dimension_semantics = [#tpu.dimension_semantics<arbitrary>], iteration_bounds = array<i64: 1>, scalar_prefetch = 0 : i64, scratch_operands = 1 : i64, tpu.core_type = #tpu.core_type<tc>, window_params = [{}, {pipeline_mode = #tpu.pipeline_mode<synchronous>, transform_indices = @transform_1, window_bounds = array<i64: 128, 128>}, {pipeline_mode = #tpu.pipeline_mode<synchronous>, transform_indices = @transform_2, window_bounds = array<i64: 128, 128>}]} {
    "tpu.region"() ({
      %17 = tpu.sem_alloc : memref<!tpu.dma_semaphore, #tpu.memory_space<semaphore_mem>>
      tpu.enqueue_dma source(%arg1 : memref<128x128xbf16, #tpu.memory_space<any>>) target(%arg4 : memref<128x128xbf16, #tpu.memory_space<vmem>>) target_semaphore(%17 : memref<!tpu.dma_semaphore, #tpu.memory_space<semaphore_mem>>)
      tpu.wait_dma2 semaphore(%17 : memref<!tpu.dma_semaphore, #tpu.memory_space<semaphore_mem>>) src(%arg1 : memref<128x128xbf16, #tpu.memory_space<any>>) dst(%arg4 : memref<128x128xbf16, #tpu.memory_space<vmem>>)
      tpu.yield
    }) : () -> ()
    %c0 = arith.constant 0 : index
    %c0_0 = arith.constant 0 : index
    %0 = vector.load %arg2[%c0, %c0_0] : memref<128x128xf32, #tpu.memory_space<vmem>>, vector<128x128xf32>
    %cst = arith.constant 0.000000e+00 : f32
    %1 = vector.broadcast %cst : f32 to vector<128x128xf32>
    %c0_1 = arith.constant 0 : index
    %c0_2 = arith.constant 0 : index
    %2 = vector.load %arg4[%c0_1, %c0_2] : memref<128x128xbf16, #tpu.memory_space<vmem>>, vector<128x128xbf16>
    %3 = arith.truncf %0 : vector<128x128xf32> to vector<128x128xbf16>
    %cst_3 = arith.constant dense<0.000000e+00> : vector<128x128xf32>
    %4 = tpu.matmul %2, %3, %cst_3 {dimension_numbers = #tpu.dot_dimension_numbers<[1], [0], [0], [1], [0, 0, 1, 1], [], []>} : vector<128x128xbf16>, vector<128x128xbf16>, vector<128x128xf32> -> vector<128x128xf32>
    %5 = arith.addf %1, %4 : vector<128x128xf32>
    %c0_4 = arith.constant 0 : index
    %c0_5 = arith.constant 0 : index
    %6 = vector.load %arg4[%c0_4, %c0_5] : memref<128x128xbf16, #tpu.memory_space<vmem>>, vector<128x128xbf16>
    %7 = arith.truncf %4 : vector<128x128xf32> to vector<128x128xbf16>
    %cst_6 = arith.constant dense<0.000000e+00> : vector<128x128xf32>
    %8 = tpu.matmul %6, %7, %cst_6 {dimension_numbers = #tpu.dot_dimension_numbers<[1], [0], [0], [1], [0, 0, 1, 1], [], []>} : vector<128x128xbf16>, vector<128x128xbf16>, vector<128x128xf32> -> vector<128x128xf32>
    %9 = arith.addf %5, %8 : vector<128x128xf32>
    %c0_7 = arith.constant 0 : index
    %c0_8 = arith.constant 0 : index
    %10 = vector.load %arg4[%c0_7, %c0_8] : memref<128x128xbf16, #tpu.memory_space<vmem>>, vector<128x128xbf16>
    %11 = arith.truncf %8 : vector<128x128xf32> to vector<128x128xbf16>
    %cst_9 = arith.constant dense<0.000000e+00> : vector<128x128xf32>
    %12 = tpu.matmul %10, %11, %cst_9 {dimension_numbers = #tpu.dot_dimension_numbers<[1], [0], [0], [1], [0, 0, 1, 1], [], []>} : vector<128x128xbf16>, vector<128x128xbf16>, vector<128x128xf32> -> vector<128x128xf32>
    %13 = arith.addf %9, %12 : vector<128x128xf32>
    %cst_10 = arith.constant 0.333333343 : f32
    %14 = vector.broadcast %cst_10 : f32 to vector<128x128xf32>
    %15 = arith.mulf %13, %14 : vector<128x128xf32>
    %c0_11 = arith.constant 0 : index
    %c0_12 = arith.constant 0 : index
    %16 = vector.load %arg3[%c0_11, %c0_12] : memref<128x128xf32, #tpu.memory_space<vmem>>, vector<128x128xf32>
    tpu.vector_store %arg3[%c0_11, %c0_12], %15 {strides = array<i32>} : memref<128x128xf32, #tpu.memory_space<vmem>>, vector<128x128xf32>,
    return
  }
  func.func @transform_1(%arg0: i32) -> (i32, i32) {
    %c0_i32 = arith.constant 0 : i32
    %c0_i32_0 = arith.constant 0 : i32
    %c0_i32_1 = arith.constant 0 : i32
    return %c0_i32, %c0_i32_0 : i32, i32
  }
  func.func @transform_2(%arg0: i32) -> (i32, i32) {
    %c0_i32 = arith.constant 0 : i32
    %c0_i32_0 = arith.constant 0 : i32
    %c0_i32_1 = arith.constant 0 : i32
    return %c0_i32, %c0_i32_0 : i32, i32
  }
}

</mosaic_0001>

<llo_original>
// kernel: fedgnn_lgcn_encoder_forward.1
$region0: #{fedgnn_lgcn_encoder_forward.1}
  #allocation0 [shape = 'u32[]', space=smem, size = 0x4, offset = 0x4, fixed_abs, tag = 'smem constant byte address 0x4 - core index']
  #allocation1 [shape = 'u32[72,128]{1,0:T(1,128)}', space=vmem, size = 0x9000, scoped, tag = 'internal scratch']
  #allocation2 [shape = 'bf16[128,128]{1,0:T(8,128)(2,1)}', space=vmem, size = 0x8000, scoped, tag = 'scratch operand']
  #allocation4 [shape = 's32[]', space=sflag, size = 0x4, offset = 0, fixed_abs, tag = 'sflag constant byte address 0x0 - dummy sync flag']
  %s0 = inlined_call_operand.vmem [shape: bf16[128,128], index: 0, kind: input, shape index: {}]
  %s1 = inlined_call_operand.vmem [shape: f32[128,128], index: 1, kind: input, shape index: {}]
  %s2 = inlined_call_operand.vmem [shape: f32[128,128], index: 2, kind: output, shape index: {}]
  %s3 = sld [smem:[#allocation0]]
  $region34: #{fedgnn_lgcn_encoder_forward.1} parent=0
    _
  %s5 = ssub.s32 1, %s3
  %s6 = scalar_select 0, %s5, %s3
  // Predicated region
  $region2: #{fedgnn_lgcn_encoder_forward.1} parent=0 // pred_check
    _
  $region3: #{fedgnn_lgcn_encoder_forward.1} parent=0 // pred_check_branch
    %8 = sbr.rel (0) target = $region5
  $region4: #{fedgnn_lgcn_encoder_forward.1} parent=0 // pred_region
    _
  $region5: #{fedgnn_lgcn_encoder_forward.1} parent=0 // pred_fallthru
    _
  $region6: #{fedgnn_lgcn_encoder_forward.1} parent=0
    #allocation3 [shape = 's32[1]{0}', space=sflag, size = 0x4, scoped, tag = 'scoped memory for fedgnn_lgcn_encoder_forward.1']
    // Predicated region
    $region7: #{fedgnn_lgcn_encoder_forward.1} parent=6 // pred_check
      _
    $region8: #{fedgnn_lgcn_encoder_forward.1} parent=6 // pred_check_branch
      %10 = sbr.rel (0) target = $region10
    $region9: #{fedgnn_lgcn_encoder_forward.1} parent=6 // pred_region
      loop: start=0, step=1, limit=1
      $region11: #{fedgnn_lgcn_encoder_forward.1} parent=9 // loop_pre_header
        _
      $region12: #{fedgnn_lgcn_encoder_forward.1} parent=9 // loop_header
        %s12 = sphi 0, %s16
        %p13 = scmp.ge.s32.totalorder %s12, 1
        %s17 = sphi %s0, %s0
        %s18 = sphi [#allocation2], [#allocation2]
      $region13: #{fedgnn_lgcn_encoder_forward.1} parent=9 // loop_header_branch
        %15 = sbr.rel (%p13) target = $region17
      $region14: #{fedgnn_lgcn_encoder_forward.1} parent=9 // loop_body
        %v19 = vld [vmem:[%s17] sm:$0xff]
        %20 = vst [vmem:[%s18] sm:$0xff] %v19
        %v21 = vld [vmem:[%s17 + $0x8] sm:$0xff]
        %22 = vst [vmem:[%s18 + $0x8] sm:$0xff] %v21
        %v23 = vld [vmem:[%s17 + $0x10] sm:$0xff]
        %24 = vst [vmem:[%s18 + $0x10] sm:$0xff] %v23
        %v25 = vld [vmem:[%s17 + $0x18] sm:$0xff]
        %26 = vst [vmem:[%s18 + $0x18] sm:$0xff] %v25
        %v27 = vld [vmem:[%s17 + $0x20] sm:$0xff]
        %28 = vst [vmem:[%s18 + $0x20] sm:$0xff] %v27
        %v29 = vld [vmem:[%s17 + $0x28] sm:$0xff]
        %30 = vst [vmem:[%s18 + $0x28] sm:$0xff] %v29
        %v31 = vld [vmem:[%s17 + $0x30] sm:$0xff]
        %32 = vst [vmem:[%s18 + $0x30] sm:$0xff] %v31
        %v33 = vld [vmem:[%s17 + $0x38] sm:$0xff]
        %34 = vst [vmem:[%s18 + $0x38] sm:$0xff] %v33
      $region15: #{fedgnn_lgcn_encoder_forward.1} parent=9 // loop_footer
        %s16 = sadd.s32 1, %s12
      $region16: #{fedgnn_lgcn_encoder_forward.1} parent=9 // loop_footer_branch
        %11 = sbr.rel target = $region12
      $region17: #{fedgnn_lgcn_encoder_forward.1} parent=9 // loop_exit
        _
    $region10: #{fedgnn_lgcn_encoder_forward.1} parent=6 // pred_fallthru
      _
    // Predicated region
    $region18: #{fedgnn_lgcn_encoder_forward.1} parent=6 // pred_check
      _
    $region19: #{fedgnn_lgcn_encoder_forward.1} parent=6 // pred_check_branch
      %36 = sbr.rel target = $region21
    $region20: #{fedgnn_lgcn_encoder_forward.1} parent=6 // pred_region
      _
    $region21: #{fedgnn_lgcn_encoder_forward.1} parent=6 // pred_fallthru
      _
    // Predicated region
    $region22: #{fedgnn_lgcn_encoder_forward.1} parent=6 // pred_check
      _
    $region23: #{fedgnn_lgcn_encoder_forward.1} parent=6 // pred_check_branch
      %39 = sbr.rel (0) target = $region25
    $region24: #{fedgnn_lgcn_encoder_forward.1} parent=6 // pred_region
      %40 = vsyncadd [#allocation3], 1024
    $region25: #{fedgnn_lgcn_encoder_forward.1} parent=6 // pred_fallthru
      _
    %s41 = smul.u32 4, 16
    %s42 = smul.u32 %s41, 1
    %s43 = sshll.u32 %s42, 4
    %44 = dma.done [#allocation3], %s43
  %v45 = vld [vmem:[%s1] sm:$0xff]
  %v46 = vld [vmem:[%s1 + $0x8] sm:$0xff]
  %v47 = vld [vmem:[%s1 + $0x10] sm:$0xff]
  %v48 = vld [vmem:[%s1 + $0x18] sm:$0xff]
  %v49 = vld [vmem:[%s1 + $0x20] sm:$0xff]
  %v50 = vld [vmem:[%s1 + $0x28] sm:$0xff]
  %v51 = vld [vmem:[%s1 + $0x30] sm:$0xff]
  %v52 = vld [vmem:[%s1 + $0x38] sm:$0xff]
  %v53 = vld [vmem:[%s1 + $0x40] sm:$0xff]
  %v54 = vld [vmem:[%s1 + $0x48] sm:$0xff]
  %v55 = vld [vmem:[%s1 + $0x50] sm:$0xff]
  %v56 = vld [vmem:[%s1 + $0x58] sm:$0xff]
  %v57 = vld [vmem:[%s1 + $0x60] sm:$0xff]
  %v58 = vld [vmem:[%s1 + $0x68] sm:$0xff]
  %v59 = vld [vmem:[%s1 + $0x70] sm:$0xff]
  %v60 = vld [vmem:[%s1 + $0x78] sm:$0xff]
  %v61 = vld [vmem:[#allocation2] sm:$0xf]
  %v62 = vld [vmem:[#allocation2 + $0x4] sm:$0xf]
  %v63 = vld [vmem:[#allocation2 + $0x8] sm:$0xf]
  %v64 = vld [vmem:[#allocation2 + $0xc] sm:$0xf]
  %v65 = vld [vmem:[#allocation2 + $0x10] sm:$0xf]
  %v66 = vld [vmem:[#allocation2 + $0x14] sm:$0xf]
  %v67 = vld [vmem:[#allocation2 + $0x18] sm:$0xf]
  %v68 = vld [vmem:[#allocation2 + $0x1c] sm:$0xf]
  %v69 = vld [vmem:[#allocation2 + $0x20] sm:$0xf]
  %v70 = vld [vmem:[#allocation2 + $0x24] sm:$0xf]
  %v71 = vld [vmem:[#allocation2 + $0x28] sm:$0xf]
  %v72 = vld [vmem:[#allocation2 + $0x2c] sm:$0xf]
  %v73 = vld [vmem:[#allocation2 + $0x30] sm:$0xf]
  %v74 = vld [vmem:[#allocation2 + $0x34] sm:$0xf]
  %v75 = vld [vmem:[#allocation2 + $0x38] sm:$0xf]
  %v76 = vld [vmem:[#allocation2 + $0x3c] sm:$0xf]
  %v77 = vpack.c.bf16 %v46, %v45
  %v78 = vpack.c.bf16 %v48, %v47
  %v79 = vpack.c.bf16 %v50, %v49
  %v80 = vpack.c.bf16 %v52, %v51
  %v81 = vpack.c.bf16 %v54, %v53
  %v82 = vpack.c.bf16 %v56, %v55
  %v83 = vpack.c.bf16 %v58, %v57
  %v84 = vpack.c.bf16 %v60, %v59
  %v101 = vunpack.c.l.b16 %v61
  %v102 = vunpack.c.l.b16 %v62
  %v103 = vunpack.c.l.b16 %v63
  %v104 = vunpack.c.l.b16 %v64
  %v105 = vunpack.c.l.b16 %v65
  %v106 = vunpack.c.l.b16 %v66
  %v107 = vunpack.c.l.b16 %v67
  %v108 = vunpack.c.l.b16 %v68
  %v109 = vunpack.c.l.b16 %v69
  %v110 = vunpack.c.l.b16 %v70
  %v111 = vunpack.c.l.b16 %v71
  %v112 = vunpack.c.l.b16 %v72
  %v113 = vunpack.c.l.b16 %v73
  %v114 = vunpack.c.l.b16 %v74
  %v115 = vunpack.c.l.b16 %v75
  %v116 = vunpack.c.l.b16 %v76
  %v117 = vpack.c.b16 %v102, %v101
  %v118 = vpack.c.b16 %v104, %v103
  %v119 = vpack.c.b16 %v106, %v105
  %v120 = vpack.c.b16 %v108, %v107
  %v121 = vpack.c.b16 %v110, %v109
  %v122 = vpack.c.b16 %v112, %v111
  %v123 = vpack.c.b16 %v114, %v113
  %v124 = vpack.c.b16 %v116, %v115
  %133 = vmatpush.bf16.msra.mxu0 %v84
  %134 = vmatpush.bf16.msra.mxu0 %v83
  %135 = vmatpush.bf16.msra.mxu0 %v82
  %136 = vmatpush.bf16.msra.mxu0 %v81
  %137 = vmatpush.bf16.msra.mxu0 %v80
  %138 = vmatpush.bf16.msra.mxu0 %v79
  %139 = vmatpush.bf16.msra.mxu0 %v78
  %140 = vmatpush.bf16.msra.mxu0 %v77
  %141 = vmatmul.bf16.gmra.mxu0 %v117
  %v142 = vpop.f32.mrf.mxu0
  %v143 = vadd.f32 0.0, %v142
  %v144 = vpop.f32.mrf.mxu0
  %v145 = vadd.f32 0.0, %v144
  %146 = vmatmul.bf16.gmra.mxu0 %v118
  %v147 = vpop.f32.mrf.mxu0
  %v148 = vadd.f32 0.0, %v147
  %v149 = vpop.f32.mrf.mxu0
  %v150 = vadd.f32 0.0, %v149
  %151 = vmatmul.bf16.gmra.mxu0 %v119
  %v152 = vpop.f32.mrf.mxu0
  %v153 = vadd.f32 0.0, %v152
  %v154 = vpop.f32.mrf.mxu0
  %v155 = vadd.f32 0.0, %v154
  %156 = vmatmul.bf16.gmra.mxu0 %v120
  %v157 = vpop.f32.mrf.mxu0
  %v158 = vadd.f32 0.0, %v157
  %v159 = vpop.f32.mrf.mxu0
  %v160 = vadd.f32 0.0, %v159
  %161 = vmatmul.bf16.gmra.mxu0 %v121
  %v162 = vpop.f32.mrf.mxu0
  %v163 = vadd.f32 0.0, %v162
  %v164 = vpop.f32.mrf.mxu0
  %v165 = vadd.f32 0.0, %v164
  %166 = vmatmul.bf16.gmra.mxu0 %v122
  %v167 = vpop.f32.mrf.mxu0
  %v168 = vadd.f32 0.0, %v167
  %v169 = vpop.f32.mrf.mxu0
  %v170 = vadd.f32 0.0, %v169
  %171 = vmatmul.bf16.gmra.mxu0 %v123
  %v172 = vpop.f32.mrf.mxu0
  %v173 = vadd.f32 0.0, %v172
  %v174 = vpop.f32.mrf.mxu0
  %v175 = vadd.f32 0.0, %v174
  %176 = vmatmul.bf16.gmra.mxu0 %v124
  %v177 = vpop.f32.mrf.mxu0
  %v178 = vadd.f32 0.0, %v177
  %v179 = vpop.f32.mrf.mxu0
  %v180 = vadd.f32 0.0, %v179
  %181 = vdwg.mxu0
  %v182 = vadd.f32 %v143, 0.0
  %v183 = vadd.f32 %v145, 0.0
  %v184 = vadd.f32 %v148, 0.0
  %v185 = vadd.f32 %v150, 0.0
  %v186 = vadd.f32 %v153, 0.0
  %v187 = vadd.f32 %v155, 0.0
  %v188 = vadd.f32 %v158, 0.0
  %v189 = vadd.f32 %v160, 0.0
  %v190 = vadd.f32 %v163, 0.0
  %v191 = vadd.f32 %v165, 0.0
  %v192 = vadd.f32 %v168, 0.0
  %v193 = vadd.f32 %v170, 0.0
  %v194 = vadd.f32 %v173, 0.0
  %v195 = vadd.f32 %v175, 0.0
  %v196 = vadd.f32 %v178, 0.0
  %v197 = vadd.f32 %v180, 0.0
  %v198 = vpack.c.bf16 %v145, %v143
  %v199 = vpack.c.bf16 %v150, %v148
  %v200 = vpack.c.bf16 %v155, %v153
  %v201 = vpack.c.bf16 %v160, %v158
  %v202 = vpack.c.bf16 %v165, %v163
  %v203 = vpack.c.bf16 %v170, %v168
  %v204 = vpack.c.bf16 %v175, %v173
  %v205 = vpack.c.bf16 %v180, %v178
  %206 = vmatpush.bf16.msra.mxu0 %v205
  %207 = vmatpush.bf16.msra.mxu0 %v204
  %208 = vmatpush.bf16.msra.mxu0 %v203
  %209 = vmatpush.bf16.msra.mxu0 %v202
  %210 = vmatpush.bf16.msra.mxu0 %v201
  %211 = vmatpush.bf16.msra.mxu0 %v200
  %212 = vmatpush.bf16.msra.mxu0 %v199
  %213 = vmatpush.bf16.msra.mxu0 %v198
  %214 = vmatmul.bf16.gmra.mxu0 %v117
  %v215 = vpop.f32.mrf.mxu0
  %v216 = vadd.f32 0.0, %v215
  %v217 = vpop.f32.mrf.mxu0
  %v218 = vadd.f32 0.0, %v217
  %219 = vmatmul.bf16.gmra.mxu0 %v118
  %v220 = vpop.f32.mrf.mxu0
  %v221 = vadd.f32 0.0, %v220
  %v222 = vpop.f32.mrf.mxu0
  %v223 = vadd.f32 0.0, %v222
  %224 = vmatmul.bf16.gmra.mxu0 %v119
  %v225 = vpop.f32.mrf.mxu0
  %v226 = vadd.f32 0.0, %v225
  %v227 = vpop.f32.mrf.mxu0
  %v228 = vadd.f32 0.0, %v227
  %229 = vmatmul.bf16.gmra.mxu0 %v120
  %v230 = vpop.f32.mrf.mxu0
  %v231 = vadd.f32 0.0, %v230
  %v232 = vpop.f32.mrf.mxu0
  %v233 = vadd.f32 0.0, %v232
  %234 = vmatmul.bf16.gmra.mxu0 %v121
  %v235 = vpop.f32.mrf.mxu0
  %v236 = vadd.f32 0.0, %v235
  %v237 = vpop.f32.mrf.mxu0
  %v238 = vadd.f32 0.0, %v237
  %239 = vmatmul.bf16.gmra.mxu0 %v122
  %v240 = vpop.f32.mrf.mxu0
  %v241 = vadd.f32 0.0, %v240
  %v242 = vpop.f32.mrf.mxu0
  %v243 = vadd.f32 0.0, %v242
  %244 = vmatmul.bf16.gmra.mxu0 %v123
  %v245 = vpop.f32.mrf.mxu0
  %v246 = vadd.f32 0.0, %v245
  %v247 = vpop.f32.mrf.mxu0
  %v248 = vadd.f32 0.0, %v247
  %249 = vmatmul.bf16.gmra.mxu0 %v124
  %v250 = vpop.f32.mrf.mxu0
  %v251 = vadd.f32 0.0, %v250
  %v252 = vpop.f32.mrf.mxu0
  %v253 = vadd.f32 0.0, %v252
  %254 = vdwg.mxu0
  %v255 = vadd.f32 %v182, %v216
  %v256 = vadd.f32 %v183, %v218
  %v257 = vadd.f32 %v184, %v221
  %v258 = vadd.f32 %v185, %v223
  %v259 = vadd.f32 %v186, %v226
  %v260 = vadd.f32 %v187, %v228
  %v261 = vadd.f32 %v188, %v231
  %v262 = vadd.f32 %v189, %v233
  %v263 = vadd.f32 %v190, %v236
  %v264 = vadd.f32 %v191, %v238
  %v265 = vadd.f32 %v192, %v241
  %v266 = vadd.f32 %v193, %v243
  %v267 = vadd.f32 %v194, %v246
  %v268 = vadd.f32 %v195, %v248
  %v269 = vadd.f32 %v196, %v251
  %v270 = vadd.f32 %v197, %v253
  %v271 = vpack.c.bf16 %v218, %v216
  %v272 = vpack.c.bf16 %v223, %v221
  %v273 = vpack.c.bf16 %v228, %v226
  %v274 = vpack.c.bf16 %v233, %v231
  %v275 = vpack.c.bf16 %v238, %v236
  %v276 = vpack.c.bf16 %v243, %v241
  %v277 = vpack.c.bf16 %v248, %v246
  %v278 = vpack.c.bf16 %v253, %v251
  %279 = vmatpush.bf16.msra.mxu0 %v278
  %280 = vmatpush.bf16.msra.mxu0 %v277
  %281 = vmatpush.bf16.msra.mxu0 %v276
  %282 = vmatpush.bf16.msra.mxu0 %v275
  %283 = vmatpush.bf16.msra.mxu0 %v274
  %284 = vmatpush.bf16.msra.mxu0 %v273
  %285 = vmatpush.bf16.msra.mxu0 %v272
  %286 = vmatpush.bf16.msra.mxu0 %v271
  %287 = vmatmul.bf16.gmra.mxu0 %v117
  %v288 = vpop.f32.mrf.mxu0
  %v289 = vadd.f32 0.0, %v288
  %v290 = vpop.f32.mrf.mxu0
  %v291 = vadd.f32 0.0, %v290
  %292 = vmatmul.bf16.gmra.mxu0 %v118
  %v293 = vpop.f32.mrf.mxu0
  %v294 = vadd.f32 0.0, %v293
  %v295 = vpop.f32.mrf.mxu0
  %v296 = vadd.f32 0.0, %v295
  %297 = vmatmul.bf16.gmra.mxu0 %v119
  %v298 = vpop.f32.mrf.mxu0
  %v299 = vadd.f32 0.0, %v298
  %v300 = vpop.f32.mrf.mxu0
  %v301 = vadd.f32 0.0, %v300
  %302 = vmatmul.bf16.gmra.mxu0 %v120
  %v303 = vpop.f32.mrf.mxu0
  %v304 = vadd.f32 0.0, %v303
  %v305 = vpop.f32.mrf.mxu0
  %v306 = vadd.f32 0.0, %v305
  %307 = vmatmul.bf16.gmra.mxu0 %v121
  %v308 = vpop.f32.mrf.mxu0
  %v309 = vadd.f32 0.0, %v308
  %v310 = vpop.f32.mrf.mxu0
  %v311 = vadd.f32 0.0, %v310
  %312 = vmatmul.bf16.gmra.mxu0 %v122
  %v313 = vpop.f32.mrf.mxu0
  %v314 = vadd.f32 0.0, %v313
  %v315 = vpop.f32.mrf.mxu0
  %v316 = vadd.f32 0.0, %v315
  %317 = vmatmul.bf16.gmra.mxu0 %v123
  %v318 = vpop.f32.mrf.mxu0
  %v319 = vadd.f32 0.0, %v318
  %v320 = vpop.f32.mrf.mxu0
  %v321 = vadd.f32 0.0, %v320
  %322 = vmatmul.bf16.gmra.mxu0 %v124
  %v323 = vpop.f32.mrf.mxu0
  %v324 = vadd.f32 0.0, %v323
  %v325 = vpop.f32.mrf.mxu0
  %v326 = vadd.f32 0.0, %v325
  %327 = vdwg.mxu0
  %v328 = vadd.f32 %v255, %v289
  %v329 = vadd.f32 %v256, %v291
  %v330 = vadd.f32 %v257, %v294
  %v331 = vadd.f32 %v258, %v296
  %v332 = vadd.f32 %v259, %v299
  %v333 = vadd.f32 %v260, %v301
  %v334 = vadd.f32 %v261, %v304
  %v335 = vadd.f32 %v262, %v306
  %v336 = vadd.f32 %v263, %v309
  %v337 = vadd.f32 %v264, %v311
  %v338 = vadd.f32 %v265, %v314
  %v339 = vadd.f32 %v266, %v316
  %v340 = vadd.f32 %v267, %v319
  %v341 = vadd.f32 %v268, %v321
  %v342 = vadd.f32 %v269, %v324
  %v343 = vadd.f32 %v270, %v326
  %v344 = vmul.f32 %v328, 0.33333334
  %v345 = vmul.f32 %v329, 0.33333334
  %v346 = vmul.f32 %v330, 0.33333334
  %v347 = vmul.f32 %v331, 0.33333334
  %v348 = vmul.f32 %v332, 0.33333334
  %v349 = vmul.f32 %v333, 0.33333334
  %v350 = vmul.f32 %v334, 0.33333334
  %v351 = vmul.f32 %v335, 0.33333334
  %v352 = vmul.f32 %v336, 0.33333334
  %v353 = vmul.f32 %v337, 0.33333334
  %v354 = vmul.f32 %v338, 0.33333334
  %v355 = vmul.f32 %v339, 0.33333334
  %v356 = vmul.f32 %v340, 0.33333334
  %v357 = vmul.f32 %v341, 0.33333334
  %v358 = vmul.f32 %v342, 0.33333334
  %v359 = vmul.f32 %v343, 0.33333334
  %360 = vst [vmem:[%s2] sm:$0xff] %v344
  %361 = vst [vmem:[%s2 + $0x8] sm:$0xff] %v345
  %362 = vst [vmem:[%s2 + $0x10] sm:$0xff] %v346
  %363 = vst [vmem:[%s2 + $0x18] sm:$0xff] %v347
  %364 = vst [vmem:[%s2 + $0x20] sm:$0xff] %v348
  %365 = vst [vmem:[%s2 + $0x28] sm:$0xff] %v349
  %366 = vst [vmem:[%s2 + $0x30] sm:$0xff] %v350
  %367 = vst [vmem:[%s2 + $0x38] sm:$0xff] %v351
  %368 = vst [vmem:[%s2 + $0x40] sm:$0xff] %v352
  %369 = vst [vmem:[%s2 + $0x48] sm:$0xff] %v353
  %370 = vst [vmem:[%s2 + $0x50] sm:$0xff] %v354
  %371 = vst [vmem:[%s2 + $0x58] sm:$0xff] %v355
  %372 = vst [vmem:[%s2 + $0x60] sm:$0xff] %v356
  %373 = vst [vmem:[%s2 + $0x68] sm:$0xff] %v357
  %374 = vst [vmem:[%s2 + $0x70] sm:$0xff] %v358
  %375 = vst [vmem:[%s2 + $0x78] sm:$0xff] %v359
  // Predicated region
  $region26: #{fedgnn_lgcn_encoder_forward.1} parent=0 // pred_check
    _
  $region27: #{fedgnn_lgcn_encoder_forward.1} parent=0 // pred_check_branch
    %377 = sbr.rel (0) target = $region29
  $region28: #{fedgnn_lgcn_encoder_forward.1} parent=0 // pred_region
    _
  $region29: #{fedgnn_lgcn_encoder_forward.1} parent=0 // pred_fallthru
    _
  // Predicated region
  $region30: #{fedgnn_lgcn_encoder_forward.1} parent=0 // pred_check
    _
  $region31: #{fedgnn_lgcn_encoder_forward.1} parent=0 // pred_check_branch
    %379 = sbr.rel (0) target = $region33
  $region32: #{fedgnn_lgcn_encoder_forward.1} parent=0 // pred_region
    _
  $region33: #{fedgnn_lgcn_encoder_forward.1} parent=0 // pred_fallthru
    _

</llo_original>
